<compile_context>
chip_gen: v5e
topology: v5e:2x2
jax: 0.10.0
libtpu: 0.0.40
codegen_flags: <defaults>
</compile_context>

<pallas_src>
import functools
import math

import jax
import jax.numpy as jnp
from jax import lax
from jax.experimental import pallas as pl
from jax.experimental.pallas import tpu as pltpu

NUM_CHUNKS = 4      # _HMLSTMCell._num_chunks
HARD_SIGM_A = 1.0   # _CalcZ() is constructed with its default a=1 (cell's a=7 unused)
LANE = 128
DEFAULT_T_BLK = 16  # timesteps per grid iteration


def _round_up(x, m):
    return ((x + m - 1) // m) * m


# ---------------------------------------------------------------------------
# Kernel
# ---------------------------------------------------------------------------
def _hmlstm_seq_kernel(pre_ref, zb_ref, ht_ref, h0_ref, c0_ref, z0_ref,
                       r_ref, u_ref,
                       h_out_ref, c_out_ref, z_out_ref,
                       h_s, c_s, z_s, *, hp, t_blk):
    # Re-initialize the carried state at the first time block of each batch block.
    @pl.when(pl.program_id(1) == 0)
    def _():
        h_s[...] = h0_ref[...]
        c_s[...] = c0_ref[...]
        z_s[...] = z0_ref[...]

    r = r_ref[...]            # (Hp, 4*Hp+128), resident across the whole grid
    u = u_ref[...]            # (Din_t, 4*Hp+128)

    def step(i, carry):
        h, c, z = carry
        pre = pre_ref[i]      # (Bb, 4*Hp+128) f32 — (hb*zb)@W + b, hoisted outside
        zb = zb_ref[i]        # (Bb, 1)
        ht = ht_ref[i]        # (Bb, Din_t)

        # Recurrent + top-down contributions: two accumulating MXU dots,
        # no lane concatenation on the serial path.
        s = pre + jnp.dot(h.astype(r.dtype), r, preferred_element_type=jnp.float32)
        s = s + jnp.dot((ht * z).astype(u.dtype), u,
                        preferred_element_type=jnp.float32)

        # Gate slices at 128-aligned lane offsets (whole-vreg reads).
        si = s[:, 0 * hp:1 * hp]
        sg = s[:, 1 * hp:2 * hp]
        so = s[:, 2 * hp:3 * hp]
        sf = s[:, 3 * hp:4 * hp]
        sz = s[:, 4 * hp:]    # (Bb, 128): boundary column replicated per lane

        ig = jax.nn.sigmoid(si) * jnp.tanh(sg)
        o = jax.nn.sigmoid(so)
        f = jax.nn.sigmoid(sf)

        one_m_z = 1.0 - z
        a_copy = one_m_z * (1.0 - zb)   # (1 - z) * (1 - z_bottom)
        a_upd = one_m_z * zb            # (1 - z) * z_bottom

        c_new = z * ig + a_copy * c + a_upd * (f * c + ig)
        otc = o * jnp.tanh(c_new)
        h_new = z * otc + a_copy * h + a_upd * otc

        # _CalcZ: HardSigm(a=1) -> clamp((a*sz+1)/2, 0, 1), then Round(th=0.5).
        # TODO(synk): confirm the exact z_tilde == 0.5 tie-break of Round().
        z_tilde = jnp.clip((HARD_SIGM_A * sz + 1.0) * 0.5, 0.0, 1.0)
        z_blk = jnp.where(z_tilde > 0.5, 1.0, 0.0)      # (Bb, 128) lane-dense

        # Lane-dense, 128-aligned stores (padded lanes hold exact zeros).
        h_out_ref[i] = h_new.astype(h_out_ref.dtype)
        c_out_ref[i] = c_new.astype(c_out_ref.dtype)
        z_out_ref[i] = z_blk.astype(z_out_ref.dtype)
        return h_new, c_new, z_blk[:, :1]

    h, c, z = lax.fori_loop(0, t_blk, step,
                            (h_s[...], c_s[...], z_s[...]), unroll=True)

    # Carry state to the next time block.
    h_s[...] = h
    c_s[...] = c
    z_s[...] = z


# ---------------------------------------------------------------------------
# pallas_call builder
# ---------------------------------------------------------------------------
def _build_seq_call(t_pad, batch, t_blk, b_blk, hp, din_t, w_dtype):
    np_pad = NUM_CHUNKS * hp + LANE
    nt = t_pad // t_blk
    nb = batch // b_blk
    itemsize = jnp.dtype(w_dtype).itemsize

    flops = 2 * t_pad * batch * (hp + din_t) * np_pad
    transcendentals = 6 * t_pad * batch * hp
    bytes_accessed = (t_pad * batch * (np_pad + din_t + 1) * 4
                      + (hp + din_t) * np_pad * itemsize
                      + batch * (2 * hp + 1) * 4
                      + t_pad * batch * (2 * hp + LANE) * 4)

    # Raise the scoped VMEM limit only when resident slab + double-buffered
    # blocks exceed the default budget (matters for production H on v5e/v7x).
    io_bytes = 2 * t_blk * b_blk * (np_pad + din_t + 1 + 2 * hp + LANE) * 4
    wt_bytes = 2 * (hp + din_t) * np_pad * itemsize + 2 * b_blk * (2 * hp + 1) * 4
    scratch_bytes = b_blk * (2 * hp + 1) * 4
    vmem_need = int(1.25 * (io_bytes + wt_bytes + scratch_bytes)) + (2 << 20)
    vmem_limit = (min(vmem_need, 96 * 1024 * 1024)
                  if vmem_need > (32 << 20) else None)

    return pl.pallas_call(
        functools.partial(_hmlstm_seq_kernel, hp=hp, t_blk=t_blk),
        grid=(nb, nt),
        in_specs=[
            pl.BlockSpec((t_blk, b_blk, np_pad), lambda b, t: (t, b, 0)),  # pre
            pl.BlockSpec((t_blk, b_blk, 1), lambda b, t: (t, b, 0)),       # z_bottom
            pl.BlockSpec((t_blk, b_blk, din_t), lambda b, t: (t, b, 0)),   # h_top
            pl.BlockSpec((b_blk, hp), lambda b, t: (b, 0)),                # h0
            pl.BlockSpec((b_blk, hp), lambda b, t: (b, 0)),                # c0
            pl.BlockSpec((b_blk, 1), lambda b, t: (b, 0)),                 # z0
            pl.BlockSpec((hp, np_pad), lambda b, t: (0, 0)),               # R (resident)
            pl.BlockSpec((din_t, np_pad), lambda b, t: (0, 0)),            # U (resident)
        ],
        out_specs=(
            pl.BlockSpec((t_blk, b_blk, hp), lambda b, t: (t, b, 0)),
            pl.BlockSpec((t_blk, b_blk, hp), lambda b, t: (t, b, 0)),
            pl.BlockSpec((t_blk, b_blk, LANE), lambda b, t: (t, b, 0)),
        ),
        out_shape=(
            jax.ShapeDtypeStruct((t_pad, batch, hp), jnp.float32),
            jax.ShapeDtypeStruct((t_pad, batch, hp), jnp.float32),
            jax.ShapeDtypeStruct((t_pad, batch, LANE), jnp.float32),
        ),
        scratch_shapes=[
            pltpu.VMEM((b_blk, hp), jnp.float32),   # carried h
            pltpu.VMEM((b_blk, hp), jnp.float32),   # carried c
            pltpu.VMEM((b_blk, 1), jnp.float32),    # carried z
        ],
        compiler_params=pltpu.CompilerParams(
            dimension_semantics=("parallel", "arbitrary"),
            vmem_limit_bytes=vmem_limit),
        cost_estimate=pl.CostEstimate(
            flops=flops, transcendentals=transcendentals,
            bytes_accessed=bytes_accessed),
    )


# ---------------------------------------------------------------------------
# Weight preparation (lane-aligned column layout)
# ---------------------------------------------------------------------------
def _prep_weights(params, use_bf16):
    W, R, U, b = params["W"], params["R"], params["U"], params["b"]
    H = R.shape[0]
    hp = _round_up(H, LANE)
    np_pad = NUM_CHUNKS * hp + LANE

    def realign_cols(m):
        # (K, 4H+1) -> (K, 4*Hp + 128): gate blocks at 128-aligned offsets,
        # boundary (sz) column replicated across the last 128 lanes so the
        # matmul emits the z block lane-dense.  Padded columns are zero.
        k = m.shape[0]
        out = jnp.zeros((k, np_pad), jnp.float32)
        for g in range(NUM_CHUNKS):
            out = out.at[:, g * hp:g * hp + H].set(m[:, g * H:(g + 1) * H])
        out = out.at[:, NUM_CHUNKS * hp:].set(
            jnp.broadcast_to(m[:, NUM_CHUNKS * H:NUM_CHUNKS * H + 1], (k, LANE)))
        return out

    w_pad = realign_cols(W.astype(jnp.float32))
    r_pad = realign_cols(R.astype(jnp.float32))
    u_pad = realign_cols(U.astype(jnp.float32))
    b_pad = realign_cols(b.reshape(1, -1).astype(jnp.float32))
    # Pad R's contraction dim so h is carried as (B, Hp) (padded lanes stay 0).
    r_pad = jnp.pad(r_pad, ((0, hp - H), (0, 0)))

    wdt = jnp.bfloat16 if use_bf16 else jnp.float32   # v6e/v7x MXU path
    return w_pad, r_pad.astype(wdt), u_pad.astype(wdt), b_pad, H, hp


# ---------------------------------------------------------------------------
# Wrappers
# ---------------------------------------------------------------------------
def hmlstm_cell3_forward_seq(params, init_state, hb_seq, zb_seq, ht_seq,
                             *, use_bf16=False, t_blk=DEFAULT_T_BLK):
    """T steps in one pallas_call: weights VMEM-resident, state carried in VMEM."""
    w_pad, r_pad, u_pad, b_pad, H, hp = _prep_weights(params, use_bf16)
    T, B, _ = hb_seq.shape
    din_t = ht_seq.shape[2]

    t_blk = max(1, min(t_blk, T))
    t_pad = _round_up(T, t_blk)
    if t_pad != T:
        pad = ((0, t_pad - T), (0, 0), (0, 0))
        hb_seq = jnp.pad(hb_seq, pad)
        zb_seq = jnp.pad(zb_seq, pad)
        ht_seq = jnp.pad(ht_seq, pad)

    # Hoisted non-recurrent contribution: one big batched matmul over all T.
    mm_dtype = jnp.bfloat16 if use_bf16 else jnp.float32
    pre = jnp.einsum("tbi,ij->tbj",
                     (hb_seq * zb_seq).astype(mm_dtype), w_pad.astype(mm_dtype),
                     preferred_element_type=jnp.float32) + b_pad   # (T_pad, B, Np_pad)

    # Batch-block ("parallel") grid axis for the second TensorCore on v7x.
    b_blk = B // 2 if (B >= 16 and (B // 2) % 8 == 0) else B

    h0 = jnp.pad(init_state["h"].astype(jnp.float32), ((0, 0), (0, hp - H)))
    c0 = jnp.pad(init_state["c"].astype(jnp.float32), ((0, 0), (0, hp - H)))
    z0 = init_state["z"].astype(jnp.float32)

    call = _build_seq_call(t_pad, B, t_blk, b_blk, hp, din_t, r_pad.dtype)
    h_seq, c_seq, z_seq = call(pre, zb_seq.astype(jnp.float32),
                               ht_seq.astype(jnp.float32),
                               h0, c0, z0, r_pad, u_pad)
    return h_seq[:T, :, :H], c_seq[:T, :, :H], z_seq[:T, :, :1]


def hmlstm_cell3_forward(params, state, *, use_bf16=False):
    """Single-step HMLSTMCell3.forward (sequence kernel with T == 1)."""
    init = {"h": state["h"], "c": state["c"], "z": state["z"]}
    h, c, z = hmlstm_cell3_forward_seq(
        params, init, state["h_bottom"][None], state["z_bottom"][None],
        state["h_top"][None], use_bf16=use_bf16, t_blk=1)
    return h[0], c[0], z[0]


# ---------------------------------------------------------------------------
# Pure-JAX references
# ---------------------------------------------------------------------------
def _reference_forward(params, state):
    W, R, U, b = params["W"], params["R"], params["U"], params["b"]
    H = R.shape[0]
    s = ((state["h_bottom"] * state["z_bottom"]) @ W
         + state["h"] @ R
         + (state["h_top"] * state["z"]) @ U
         + b)
    si, sg, so, sf, sz = (s[:, :H], s[:, H:2 * H], s[:, 2 * H:3 * H],
                          s[:, 3 * H:4 * H], s[:, 4 * H:])
    i = jax.nn.sigmoid(si)
    g = jnp.tanh(sg)
    o = jax.nn.sigmoid(so)
    f = jax.nn.sigmoid(sf)
    z, zb = state["z"], state["z_bottom"]
    c0, h0 = state["c"], state["h"]
    c = z * (i * g) + (1 - z) * (1 - zb) * c0 + (1 - z) * zb * (f * c0 + i * g)
    h = (z * o * jnp.tanh(c) + (1 - z) * (1 - zb) * h0
         + (1 - z) * zb * o * jnp.tanh(c))
    z_tilde = jnp.clip((HARD_SIGM_A * sz + 1.0) * 0.5, 0.0, 1.0)
    z_new = jnp.where(z_tilde > 0.5, 1.0, 0.0)
    return h, c, z_new


def _reference_seq(params, init_state, hb_seq, zb_seq, ht_seq):
    def step(carry, xs):
        h, c, z = carry
        hb, zb, ht = xs
        st = {"h_bottom": hb, "z_bottom": zb, "h": h,
              "h_top": ht, "z": z, "c": c}
        h2, c2, z2 = _reference_forward(params, st)
        return (h2, c2, z2), (h2, c2, z2)

    _, outs = jax.lax.scan(
        step, (init_state["h"], init_state["c"], init_state["z"]),
        (hb_seq, zb_seq, ht_seq))
    return outs


def init_params(key, input_bottom_size, hidden_size, input_top_size):
    # reset_parameters(): uniform(-sd, sd), sd = 1/sqrt(hidden_size)
    sd = 1.0 / math.sqrt(hidden_size)
    G1 = NUM_CHUNKS * hidden_size + 1
    ku, kr, kw, kb = jax.random.split(key, 4)
    return {
        "U": jax.random.uniform(ku, (input_top_size, G1), jnp.float32, -sd, sd),
        "R": jax.random.uniform(kr, (hidden_size, G1), jnp.float32, -sd, sd),
        "W": jax.random.uniform(kw, (input_bottom_size, G1), jnp.float32, -sd, sd),
        "b": jax.random.uniform(kb, (G1,), jnp.float32, -sd, sd),
    }


if __name__ == "__main__":
    B = 8
    INPUT_BOTTOM = 32
    HIDDEN = 32
    INPUT_TOP = 32
    T = 6

    root = jax.random.PRNGKey(0)
    kp, k1, k2, k3, k4, k5, k6, k7, k8, k9 = jax.random.split(root, 10)

    params = init_params(kp, INPUT_BOTTOM, HIDDEN, INPUT_TOP)
    state = {
        "h_bottom": jax.random.normal(k1, (B, INPUT_BOTTOM), jnp.float32),
        "h": jax.random.normal(k2, (B, HIDDEN), jnp.float32),
        "h_top": jax.random.normal(k3, (B, INPUT_TOP), jnp.float32),
        "c": jax.random.normal(k4, (B, HIDDEN), jnp.float32),
        "z": jax.random.bernoulli(k5, 0.5, (B, 1)).astype(jnp.float32),
        "z_bottom": jax.random.bernoulli(k6, 0.5, (B, 1)).astype(jnp.float32),
    }

    # --- single step, f32 ---
    h_new, c_new, z_new = hmlstm_cell3_forward(params, state)
    jax.block_until_ready((h_new, c_new, z_new))
    h_ref, c_ref, z_ref = _reference_forward(params, state)
    assert jnp.allclose(h_new, h_ref, atol=1e-4, rtol=1e-4)
    assert jnp.allclose(c_new, c_ref, atol=1e-4, rtol=1e-4)
    assert jnp.array_equal(z_new, z_ref)

    # --- single step, bf16 R/U weights (v6e/v7x MXU path), f32 accumulation ---
    h_bf, c_bf, z_bf = hmlstm_cell3_forward(params, state, use_bf16=True)
    jax.block_until_ready((h_bf, c_bf, z_bf))
    assert jnp.allclose(h_bf, h_ref, atol=3e-2, rtol=3e-2)
    assert jnp.allclose(c_bf, c_ref, atol=3e-2, rtol=3e-2)
    # (z not asserted for bf16: a near-zero boundary pre-activation may flip.)

    # --- sequence mode: T steps, time-blocked grid, weights VMEM-resident ---
    hb_seq = jax.random.normal(k7, (T, B, INPUT_BOTTOM), jnp.float32)
    ht_seq = jax.random.normal(k8, (T, B, INPUT_TOP), jnp.float32)
    zb_seq = jax.random.bernoulli(k9, 0.5, (T, B, 1)).astype(jnp.float32)
    init_state = {"h": state["h"], "c": state["c"], "z": state["z"]}

    hs, cs, zs = hmlstm_cell3_forward_seq(params, init_state,
                                          hb_seq, zb_seq, ht_seq)
    jax.block_until_ready((hs, cs, zs))
    hs_ref, cs_ref, zs_ref = _reference_seq(params, init_state,
                                            hb_seq, zb_seq, ht_seq)
    assert jnp.allclose(hs, hs_ref, atol=1e-4, rtol=1e-4)
    assert jnp.allclose(cs, cs_ref, atol=1e-4, rtol=1e-4)
    assert jnp.array_equal(zs, zs_ref)

    print("KERNEL_OK")
</pallas_src>

<mosaic_0001>
module attributes {stable_mosaic.version = 11 : i64} {
  func.func @_hmlstm_seq_kernel(%arg0: i32, %arg1: i32, %arg2: memref<1x8x640xf32, #tpu.memory_space<vmem>>, %arg3: memref<1x8x1xf32, #tpu.memory_space<vmem>>, %arg4: memref<1x8x32xf32, #tpu.memory_space<vmem>>, %arg5: memref<8x128xf32, #tpu.memory_space<vmem>>, %arg6: memref<8x128xf32, #tpu.memory_space<vmem>>, %arg7: memref<8x1xf32, #tpu.memory_space<vmem>>, %arg8: memref<128x640xf32, #tpu.memory_space<vmem>>, %arg9: memref<32x640xf32, #tpu.memory_space<vmem>>, %arg10: memref<1x8x128xf32, #tpu.memory_space<vmem>>, %arg11: memref<1x8x128xf32, #tpu.memory_space<vmem>>, %arg12: memref<1x8x128xf32, #tpu.memory_space<vmem>>, %arg13: memref<8x128xf32, #tpu.memory_space<vmem>>, %arg14: memref<8x128xf32, #tpu.memory_space<vmem>>, %arg15: memref<8x1xf32, #tpu.memory_space<vmem>>) attributes {dimension_semantics = [#tpu.dimension_semantics<parallel>, #tpu.dimension_semantics<arbitrary>], iteration_bounds = array<i64: 1, 1>, scalar_prefetch = 0 : i64, scratch_operands = 3 : i64, tpu.core_type = #tpu.core_type<tc>, window_params = [{transform_indices = @transform_0, window_bounds = array<i64: 1, 8, 640>}, {transform_indices = @transform_1, window_bounds = array<i64: 1, 8, 1>}, {transform_indices = @transform_2, window_bounds = array<i64: 1, 8, 32>}, {transform_indices = @transform_3, window_bounds = array<i64: 8, 128>}, {transform_indices = @transform_4, window_bounds = array<i64: 8, 128>}, {transform_indices = @transform_5, window_bounds = array<i64: 8, 1>}, {pipeline_mode = #tpu.pipeline_mode<synchronous>, transform_indices = @transform_6, window_bounds = array<i64: 128, 640>}, {pipeline_mode = #tpu.pipeline_mode<synchronous>, transform_indices = @transform_7, window_bounds = array<i64: 32, 640>}, {transform_indices = @transform_8, window_bounds = array<i64: 1, 8, 128>}, {transform_indices = @transform_9, window_bounds = array<i64: 1, 8, 128>}, {transform_indices = @transform_10, window_bounds = array<i64: 1, 8, 128>}]} {
    %c0_i32 = arith.constant 0 : i32
    %0 = arith.cmpi eq, %arg1, %c0_i32 : i32
    %1 = arith.extui %0 : i1 to i32
    %c0_i32_0 = arith.constant 0 : i32
    %2 = arith.cmpi ne, %1, %c0_i32_0 : i32
    scf.if %2 {
      %c0_43 = arith.constant 0 : index
      %c0_44 = arith.constant 0 : index
      %102 = vector.load %arg5[%c0_43, %c0_44] : memref<8x128xf32, #tpu.memory_space<vmem>>, vector<8x128xf32>
      %c0_45 = arith.constant 0 : index
      %c0_46 = arith.constant 0 : index
      %103 = vector.load %arg13[%c0_45, %c0_46] : memref<8x128xf32, #tpu.memory_space<vmem>>, vector<8x128xf32>
      tpu.vector_store %arg13[%c0_45, %c0_46], %102 {strides = array<i32>} : memref<8x128xf32, #tpu.memory_space<vmem>>, vector<8x128xf32>,
      %c0_47 = arith.constant 0 : index
      %c0_48 = arith.constant 0 : index
      %104 = vector.load %arg6[%c0_47, %c0_48] : memref<8x128xf32, #tpu.memory_space<vmem>>, vector<8x128xf32>
      %c0_49 = arith.constant 0 : index
      %c0_50 = arith.constant 0 : index
      %105 = vector.load %arg14[%c0_49, %c0_50] : memref<8x128xf32, #tpu.memory_space<vmem>>, vector<8x128xf32>
      tpu.vector_store %arg14[%c0_49, %c0_50], %104 {strides = array<i32>} : memref<8x128xf32, #tpu.memory_space<vmem>>, vector<8x128xf32>,
      %c0_51 = arith.constant 0 : index
      %c0_52 = arith.constant 0 : index
      %106 = vector.load %arg7[%c0_51, %c0_52] : memref<8x1xf32, #tpu.memory_space<vmem>>, vector<8x1xf32>
      %c0_53 = arith.constant 0 : index
      %c0_54 = arith.constant 0 : index
      %107 = vector.load %arg15[%c0_53, %c0_54] : memref<8x1xf32, #tpu.memory_space<vmem>>, vector<8x1xf32>
      tpu.vector_store %arg15[%c0_53, %c0_54], %106 {strides = array<i32>} : memref<8x1xf32, #tpu.memory_space<vmem>>, vector<8x1xf32>,
    } else {
    }
    %c0 = arith.constant 0 : index
    %c0_1 = arith.constant 0 : index
    %3 = vector.load %arg8[%c0, %c0_1] : memref<128x640xf32, #tpu.memory_space<vmem>>, vector<128x640xf32>
    %c0_2 = arith.constant 0 : index
    %c0_3 = arith.constant 0 : index
    %4 = vector.load %arg9[%c0_2, %c0_3] : memref<32x640xf32, #tpu.memory_space<vmem>>, vector<32x640xf32>
    %c0_4 = arith.constant 0 : index
    %c0_5 = arith.constant 0 : index
    %5 = vector.load %arg13[%c0_4, %c0_5] : memref<8x128xf32, #tpu.memory_space<vmem>>, vector<8x128xf32>
    %c0_6 = arith.constant 0 : index
    %c0_7 = arith.constant 0 : index
    %6 = vector.load %arg14[%c0_6, %c0_7] : memref<8x128xf32, #tpu.memory_space<vmem>>, vector<8x128xf32>
    %c0_8 = arith.constant 0 : index
    %c0_9 = arith.constant 0 : index
    %7 = vector.load %arg15[%c0_8, %c0_9] : memref<8x1xf32, #tpu.memory_space<vmem>>, vector<8x1xf32>
    %c0_i32_10 = arith.constant 0 : i32
    %8 = arith.index_cast %c0_i32_10 : i32 to index
    %c0_11 = arith.constant 0 : index
    %c0_12 = arith.constant 0 : index
    %9 = vector.load %arg2[%8, %c0_11, %c0_12] : memref<1x8x640xf32, #tpu.memory_space<vmem>>, vector<1x8x640xf32>
    %10 = vector.shape_cast %9 : vector<1x8x640xf32> to vector<8x640xf32>
    %11 = arith.index_cast %c0_i32_10 : i32 to index
    %c0_13 = arith.constant 0 : index
    %c0_14 = arith.constant 0 : index
    %12 = vector.load %arg3[%11, %c0_13, %c0_14] : memref<1x8x1xf32, #tpu.memory_space<vmem>>, vector<1x8x1xf32>
    %13 = vector.shape_cast %12 : vector<1x8x1xf32> to vector<8x1xf32>
    %14 = arith.index_cast %c0_i32_10 : i32 to index
    %c0_15 = arith.constant 0 : index
    %c0_16 = arith.constant 0 : index
    %15 = vector.load %arg4[%14, %c0_15, %c0_16] : memref<1x8x32xf32, #tpu.memory_space<vmem>>, vector<1x8x32xf32>
    %16 = vector.shape_cast %15 : vector<1x8x32xf32> to vector<8x32xf32>
    %cst = arith.constant dense<0.000000e+00> : vector<8x640xf32>
    %17 = tpu.matmul %5, %3, %cst {dimension_numbers = #tpu.dot_dimension_numbers<[1], [0], [0], [1], [0, 0, 1, 1], [], []>} : vector<8x128xf32>, vector<128x640xf32>, vector<8x640xf32> -> vector<8x640xf32>
    %18 = arith.addf %10, %17 : vector<8x640xf32>
    %19 = vector.broadcast %7 : vector<8x1xf32> to vector<8x32xf32>
    %20 = arith.mulf %16, %19 : vector<8x32xf32>
    %cst_17 = arith.constant dense<0.000000e+00> : vector<8x640xf32>
    %21 = tpu.matmul %20, %4, %cst_17 {dimension_numbers = #tpu.dot_dimension_numbers<[1], [0], [0], [1], [0, 0, 1, 1], [], []>} : vector<8x32xf32>, vector<32x640xf32>, vector<8x640xf32> -> vector<8x640xf32>
    %22 = arith.addf %18, %21 : vector<8x640xf32>
    %23 = vector.extract_strided_slice %22 {offsets = [0, 0], sizes = [8, 128], strides = [1, 1]} : vector<8x640xf32> to vector<8x128xf32>
    %24 = vector.extract_strided_slice %22 {offsets = [0, 128], sizes = [8, 128], strides = [1, 1]} : vector<8x640xf32> to vector<8x128xf32>
    %25 = vector.extract_strided_slice %22 {offsets = [0, 256], sizes = [8, 128], strides = [1, 1]} : vector<8x640xf32> to vector<8x128xf32>
    %26 = vector.extract_strided_slice %22 {offsets = [0, 384], sizes = [8, 128], strides = [1, 1]} : vector<8x640xf32> to vector<8x128xf32>
    %27 = vector.extract_strided_slice %22 {offsets = [0, 512], sizes = [8, 128], strides = [1, 1]} : vector<8x640xf32> to vector<8x128xf32>
    %28 = arith.negf %23 : vector<8x128xf32>
    %29 = math.exp %28 : vector<8x128xf32>
    %cst_18 = arith.constant 1.000000e+00 : f32
    %30 = vector.broadcast %cst_18 : f32 to vector<8x128xf32>
    %31 = arith.addf %30, %29 : vector<8x128xf32>
    %32 = arith.divf %30, %31 : vector<8x128xf32>
    %33 = math.tanh %24 : vector<8x128xf32>
    %34 = arith.mulf %32, %33 : vector<8x128xf32>
    %35 = arith.negf %25 : vector<8x128xf32>
    %36 = math.exp %35 : vector<8x128xf32>
    %cst_19 = arith.constant 1.000000e+00 : f32
    %37 = vector.broadcast %cst_19 : f32 to vector<8x128xf32>
    %38 = arith.addf %37, %36 : vector<8x128xf32>
    %39 = arith.divf %37, %38 : vector<8x128xf32>
    %40 = arith.negf %26 : vector<8x128xf32>
    %41 = math.exp %40 : vector<8x128xf32>
    %cst_20 = arith.constant 1.000000e+00 : f32
    %42 = vector.broadcast %cst_20 : f32 to vector<8x128xf32>
    %43 = arith.addf %42, %41 : vector<8x128xf32>
    %44 = arith.divf %42, %43 : vector<8x128xf32>
    %cst_21 = arith.constant 1.000000e+00 : f32
    %45 = vector.broadcast %cst_21 : f32 to vector<8x1xf32>
    %46 = arith.subf %45, %7 : vector<8x1xf32>
    %cst_22 = arith.constant 1.000000e+00 : f32
    %47 = vector.broadcast %cst_22 : f32 to vector<8x1xf32>
    %48 = arith.subf %47, %13 : vector<8x1xf32>
    %49 = arith.mulf %46, %48 : vector<8x1xf32>
    %50 = arith.mulf %46, %13 : vector<8x1xf32>
    %51 = vector.broadcast %7 : vector<8x1xf32> to vector<8x128xf32>
    %52 = arith.mulf %51, %34 : vector<8x128xf32>
    %53 = vector.broadcast %49 : vector<8x1xf32> to vector<8x128xf32>
    %54 = arith.mulf %53, %6 : vector<8x128xf32>
    %55 = arith.addf %52, %54 : vector<8x128xf32>
    %56 = arith.mulf %44, %6 : vector<8x128xf32>
    %57 = arith.addf %56, %34 : vector<8x128xf32>
    %58 = vector.broadcast %50 : vector<8x1xf32> to vector<8x128xf32>
    %59 = arith.mulf %58, %57 : vector<8x128xf32>
    %60 = arith.addf %55, %59 : vector<8x128xf32>
    %61 = math.tanh %60 : vector<8x128xf32>
    %62 = arith.mulf %39, %61 : vector<8x128xf32>
    %63 = vector.broadcast %7 : vector<8x1xf32> to vector<8x128xf32>
    %64 = arith.mulf %63, %62 : vector<8x128xf32>
    %65 = vector.broadcast %49 : vector<8x1xf32> to vector<8x128xf32>
    %66 = arith.mulf %65, %5 : vector<8x128xf32>
    %67 = arith.addf %64, %66 : vector<8x128xf32>
    %68 = vector.broadcast %50 : vector<8x1xf32> to vector<8x128xf32>
    %69 = arith.mulf %68, %62 : vector<8x128xf32>
    %70 = arith.addf %67, %69 : vector<8x128xf32>
    %cst_23 = arith.constant 1.000000e+00 : f32
    %71 = vector.broadcast %cst_23 : f32 to vector<8x128xf32>
    %72 = arith.mulf %71, %27 : vector<8x128xf32>
    %cst_24 = arith.constant 1.000000e+00 : f32
    %73 = vector.broadcast %cst_24 : f32 to vector<8x128xf32>
    %74 = arith.addf %72, %73 : vector<8x128xf32>
    %cst_25 = arith.constant 5.000000e-01 : f32
    %75 = vector.broadcast %cst_25 : f32 to vector<8x128xf32>
    %76 = arith.mulf %74, %75 : vector<8x128xf32>
    %cst_26 = arith.constant 0.000000e+00 : f32
    %cst_27 = arith.constant 1.000000e+00 : f32
    %77 = vector.broadcast %cst_26 : f32 to vector<8x128xf32>
    %78 = arith.maximumf %77, %76 : vector<8x128xf32>
    %79 = vector.broadcast %cst_27 : f32 to vector<8x128xf32>
    %80 = arith.minimumf %79, %78 : vector<8x128xf32>
    %cst_28 = arith.constant 5.000000e-01 : f32
    %81 = vector.broadcast %cst_28 : f32 to vector<8x128xf32>
    %82 = arith.cmpf ogt, %80, %81 : vector<8x128xf32>
    %cst_29 = arith.constant 1.000000e+00 : f32
    %cst_30 = arith.constant 0.000000e+00 : f32
    %83 = vector.broadcast %cst_29 : f32 to vector<8x128xf32>
    %84 = vector.broadcast %cst_30 : f32 to vector<8x128xf32>
    %85 = arith.select %82, %83, %84 : vector<8x128xi1>, vector<8x128xf32>
    %86 = arith.index_cast %c0_i32_10 : i32 to index
    %c0_31 = arith.constant 0 : index
    %c0_32 = arith.constant 0 : index
    %87 = vector.load %arg10[%86, %c0_31, %c0_32] : memref<1x8x128xf32, #tpu.memory_space<vmem>>, vector<1x8x128xf32>
    %88 = vector.shape_cast %87 : vector<1x8x128xf32> to vector<8x128xf32>
    %89 = vector.shape_cast %70 : vector<8x128xf32> to vector<1x8x128xf32>
    tpu.vector_store %arg10[%86, %c0_31, %c0_32], %89 {strides = array<i32>} : memref<1x8x128xf32, #tpu.memory_space<vmem>>, vector<1x8x128xf32>,
    %90 = arith.index_cast %c0_i32_10 : i32 to index
    %c0_33 = arith.constant 0 : index
    %c0_34 = arith.constant 0 : index
    %91 = vector.load %arg11[%90, %c0_33, %c0_34] : memref<1x8x128xf32, #tpu.memory_space<vmem>>, vector<1x8x128xf32>
    %92 = vector.shape_cast %91 : vector<1x8x128xf32> to vector<8x128xf32>
    %93 = vector.shape_cast %60 : vector<8x128xf32> to vector<1x8x128xf32>
    tpu.vector_store %arg11[%90, %c0_33, %c0_34], %93 {strides = array<i32>} : memref<1x8x128xf32, #tpu.memory_space<vmem>>, vector<1x8x128xf32>,
    %94 = arith.index_cast %c0_i32_10 : i32 to index
    %c0_35 = arith.constant 0 : index
    %c0_36 = arith.constant 0 : index
    %95 = vector.load %arg12[%94, %c0_35, %c0_36] : memref<1x8x128xf32, #tpu.memory_space<vmem>>, vector<1x8x128xf32>
    %96 = vector.shape_cast %95 : vector<1x8x128xf32> to vector<8x128xf32>
    %97 = vector.shape_cast %85 : vector<8x128xf32> to vector<1x8x128xf32>
    tpu.vector_store %arg12[%94, %c0_35, %c0_36], %97 {strides = array<i32>} : memref<1x8x128xf32, #tpu.memory_space<vmem>>, vector<1x8x128xf32>,
    %98 = vector.extract_strided_slice %85 {offsets = [0, 0], sizes = [8, 1], strides = [1, 1]} : vector<8x128xf32> to vector<8x1xf32>
    %c1_i32 = arith.constant 1 : i32
    %c0_37 = arith.constant 0 : index
    %c0_38 = arith.constant 0 : index
    %99 = vector.load %arg13[%c0_37, %c0_38] : memref<8x128xf32, #tpu.memory_space<vmem>>, vector<8x128xf32>
    tpu.vector_store %arg13[%c0_37, %c0_38], %70 {strides = array<i32>} : memref<8x128xf32, #tpu.memory_space<vmem>>, vector<8x128xf32>,
    %c0_39 = arith.constant 0 : index
    %c0_40 = arith.constant 0 : index
    %100 = vector.load %arg14[%c0_39, %c0_40] : memref<8x128xf32, #tpu.memory_space<vmem>>, vector<8x128xf32>
    tpu.vector_store %arg14[%c0_39, %c0_40], %60 {strides = array<i32>} : memref<8x128xf32, #tpu.memory_space<vmem>>, vector<8x128xf32>,
    %c0_41 = arith.constant 0 : index
    %c0_42 = arith.constant 0 : index
    %101 = vector.load %arg15[%c0_41, %c0_42] : memref<8x1xf32, #tpu.memory_space<vmem>>, vector<8x1xf32>
    tpu.vector_store %arg15[%c0_41, %c0_42], %98 {strides = array<i32>} : memref<8x1xf32, #tpu.memory_space<vmem>>, vector<8x1xf32>,
    return
  }
  func.func @transform_0(%arg0: i32, %arg1: i32) -> (i32, i32, i32) {
    %c0_i32 = arith.constant 0 : i32
    %c0_i32_0 = arith.constant 0 : i32
    return %arg1, %arg0, %c0_i32 : i32, i32, i32
  }
  func.func @transform_1(%arg0: i32, %arg1: i32) -> (i32, i32, i32) {
    %c0_i32 = arith.constant 0 : i32
    %c0_i32_0 = arith.constant 0 : i32
    return %arg1, %arg0, %c0_i32 : i32, i32, i32
  }
  func.func @transform_2(%arg0: i32, %arg1: i32) -> (i32, i32, i32) {
    %c0_i32 = arith.constant 0 : i32
    %c0_i32_0 = arith.constant 0 : i32
    return %arg1, %arg0, %c0_i32 : i32, i32, i32
  }
  func.func @transform_3(%arg0: i32, %arg1: i32) -> (i32, i32) {
    %c0_i32 = arith.constant 0 : i32
    %c0_i32_0 = arith.constant 0 : i32
    return %arg0, %c0_i32 : i32, i32
  }
  func.func @transform_4(%arg0: i32, %arg1: i32) -> (i32, i32) {
    %c0_i32 = arith.constant 0 : i32
    %c0_i32_0 = arith.constant 0 : i32
    return %arg0, %c0_i32 : i32, i32
  }
  func.func @transform_5(%arg0: i32, %arg1: i32) -> (i32, i32) {
    %c0_i32 = arith.constant 0 : i32
    %c0_i32_0 = arith.constant 0 : i32
    return %arg0, %c0_i32 : i32, i32
  }
  func.func @transform_6(%arg0: i32, %arg1: i32) -> (i32, i32) {
    %c0_i32 = arith.constant 0 : i32
    %c0_i32_0 = arith.constant 0 : i32
    %c0_i32_1 = arith.constant 0 : i32
    return %c0_i32, %c0_i32_0 : i32, i32
  }
  func.func @transform_7(%arg0: i32, %arg1: i32) -> (i32, i32) {
    %c0_i32 = arith.constant 0 : i32
    %c0_i32_0 = arith.constant 0 : i32
    %c0_i32_1 = arith.constant 0 : i32
    return %c0_i32, %c0_i32_0 : i32, i32
  }
  func.func @transform_8(%arg0: i32, %arg1: i32) -> (i32, i32, i32) {
    %c0_i32 = arith.constant 0 : i32
    %c0_i32_0 = arith.constant 0 : i32
    return %arg1, %arg0, %c0_i32 : i32, i32, i32
  }
  func.func @transform_9(%arg0: i32, %arg1: i32) -> (i32, i32, i32) {
    %c0_i32 = arith.constant 0 : i32
    %c0_i32_0 = arith.constant 0 : i32
    return %arg1, %arg0, %c0_i32 : i32, i32, i32
  }
  func.func @transform_10(%arg0: i32, %arg1: i32) -> (i32, i32, i32) {
    %c0_i32 = arith.constant 0 : i32
    %c0_i32_0 = arith.constant 0 : i32
    return %arg1, %arg0, %c0_i32 : i32, i32, i32
  }
}

</mosaic_0001>

<llo_original>
// kernel: tpu_custom_call.1
$region0: #{tpu_custom_call.1}
  #allocation0 [shape = 'u32[]', space=smem, size = 0x4, offset = 0x4, fixed_abs, tag = 'smem constant byte address 0x4 - core index']
  #allocation1 [shape = 'u32[72,128]{1,0:T(1,128)}', space=vmem, size = 0x9000, scoped, tag = 'internal scratch']
  #allocation2 [shape = 'f32[8,128]{1,0:T(8,128)}', space=vmem, size = 0x1000, scoped, tag = 'scratch operand']
  #allocation3 [shape = 'f32[8,128]{1,0:T(8,128)}', space=vmem, size = 0x1000, scoped, tag = 'scratch operand']
  #allocation4 [shape = 'f32[8,1]{1,0:T(8,128)}', space=vmem, size = 0x1000, scoped, tag = 'scratch operand']
  %s0 = inlined_call_operand.hbm [shape: f32[1,8,640], index: 0, kind: input, shape index: {}]
  %s1 = inlined_call_operand.vmem [shape: f32[1,8,1], index: 1, kind: input, shape index: {}]
  %s2 = inlined_call_operand.vmem [shape: f32[1,8,32], index: 2, kind: input, shape index: {}]
  %s3 = inlined_call_operand.vmem [shape: f32[8,128], index: 3, kind: input, shape index: {}]
  %s4 = inlined_call_operand.hbm [shape: f32[8,128], index: 4, kind: input, shape index: {}]
  %s5 = inlined_call_operand.vmem [shape: f32[8,1], index: 5, kind: input, shape index: {}]
  %s6 = inlined_call_operand.hbm [shape: f32[128,640], index: 6, kind: input, shape index: {}]
  %s7 = inlined_call_operand.hbm [shape: f32[32,640], index: 7, kind: input, shape index: {}]
  %s8 = inlined_call_operand.hbm [shape: f32[1,8,128], index: 8, kind: output, shape index: {0}]
  %s9 = inlined_call_operand.hbm [shape: f32[1,8,128], index: 9, kind: output, shape index: {1}]
  %s10 = inlined_call_operand.hbm [shape: f32[1,8,128], index: 10, kind: output, shape index: {2}]
  %11 = xla_tuple %s8, %s9, %s10
  %s12 = sld [smem:[#allocation0]]
  $region78: #{tpu_custom_call.1} parent=0
    _
  %s14 = ssub.s32 1, %s12
  %s15 = scalar_select 0, %s14, %s12
  $region1: #{tpu_custom_call.1} parent=0
    #allocation5 [shape = 'u8[20480]{0}', space=vmem, size = 0x5000, scoped, tag = 'input window, operand 0, single buffered']
    #allocation6 [shape = 's32[1]{0}', space=sflag, size = 0x4, scoped, tag = 'scoped memory for tpu_custom_call.1']
    #allocation7 [shape = 's32[1]{0}', space=sflag, size = 0x4, scoped, tag = 'scoped memory for tpu_custom_call.1']
    #allocation8 [shape = 'u8[4096]{0}', space=vmem, size = 0x1000, scoped, tag = 'input window, operand 4, single buffered']
    #allocation9 [shape = 's32[1]{0}', space=sflag, size = 0x4, scoped, tag = 'scoped memory for tpu_custom_call.1']
    #allocation10 [shape = 'u8[327680]{0}', space=vmem, size = 0x50000, scoped, tag = 'input window, operand 6, single buffered']
    #allocation11 [shape = 'u8[81920]{0}', space=vmem, size = 0x14000, scoped, tag = 'input window, operand 7, single buffered']
    #allocation12 [shape = 's32[1]{0}', space=sflag, size = 0x4, scoped, tag = 'scoped memory for tpu_custom_call.1']
    #allocation13 [shape = 'u8[4096]{0}', space=vmem, size = 0x1000, scoped, tag = 'output window, operand 0, single buffered']
    #allocation14 [shape = 'u8[4096]{0}', space=vmem, size = 0x1000, scoped, tag = 'output window, operand 1, single buffered']
    #allocation15 [shape = 's32[1]{0}', space=sflag, size = 0x4, scoped, tag = 'scoped memory for tpu_custom_call.1']
    #allocation16 [shape = 'u8[4096]{0}', space=vmem, size = 0x1000, scoped, tag = 'output window, operand 2, single buffered']
    %16 = vsyncpa [#allocation6], 0
    %17 = vsyncpa [#allocation9], 0
    %18 = vsyncpa [#allocation12], 0
    %19 = vsyncpa [#allocation7], 0
    %20 = vsyncpa [#allocation15], 0
    // Predicated region
    $region2: #{tpu_custom_call.1} parent=1 // pred_check
      _
    $region3: #{tpu_custom_call.1} parent=1 // pred_check_branch
      %22 = sbr.rel (0) target = $region5
    $region4: #{tpu_custom_call.1} parent=1 // pred_region
      %24 = vsyncadd [#allocation6], 0
      %s26 = sshll.u32 %s0, 4
      %s27 = int_to_ptr.hbm [resolvable:$true] %s26
      %s28 = sshll.u32 [#allocation5], 4
      %s29 = int_to_ptr.vmem [resolvable:$true] %s28
      %31 = dma.hbm_to_vmem [thread:$0]  %s27, 640, %s29, [#allocation6]
    $region5: #{tpu_custom_call.1} parent=1 // pred_fallthru
      _
    // Predicated region
    $region6: #{tpu_custom_call.1} parent=1 // pred_check
      _
    $region7: #{tpu_custom_call.1} parent=1 // pred_check_branch
      %33 = sbr.rel (0) target = $region9
    $region8: #{tpu_custom_call.1} parent=1 // pred_region
      _
    $region9: #{tpu_custom_call.1} parent=1 // pred_fallthru
      _
    // Predicated region
    $region10: #{tpu_custom_call.1} parent=1 // pred_check
      _
    $region11: #{tpu_custom_call.1} parent=1 // pred_check_branch
      %35 = sbr.rel (0) target = $region13
    $region12: #{tpu_custom_call.1} parent=1 // pred_region
      _
    $region13: #{tpu_custom_call.1} parent=1 // pred_fallthru
      _
    // Predicated region
    $region14: #{tpu_custom_call.1} parent=1 // pred_check
      _
    $region15: #{tpu_custom_call.1} parent=1 // pred_check_branch
      %37 = sbr.rel (0) target = $region17
    $region16: #{tpu_custom_call.1} parent=1 // pred_region
      _
    $region17: #{tpu_custom_call.1} parent=1 // pred_fallthru
      _
    // Predicated region
    $region18: #{tpu_custom_call.1} parent=1 // pred_check
      _
    $region19: #{tpu_custom_call.1} parent=1 // pred_check_branch
      %39 = sbr.rel (0) target = $region21
    $region20: #{tpu_custom_call.1} parent=1 // pred_region
      %41 = vsyncadd [#allocation9], 0
      %s43 = sshll.u32 %s4, 4
      %s44 = int_to_ptr.hbm [resolvable:$true] %s43
      %s45 = sshll.u32 [#allocation8], 4
      %s46 = int_to_ptr.vmem [resolvable:$true] %s45
      %48 = dma.hbm_to_vmem [thread:$0]  %s44, 128, %s46, [#allocation9]
    $region21: #{tpu_custom_call.1} parent=1 // pred_fallthru
      _
    // Predicated region
    $region22: #{tpu_custom_call.1} parent=1 // pred_check
      _
    $region23: #{tpu_custom_call.1} parent=1 // pred_check_branch
      %50 = sbr.rel (0) target = $region25
    $region24: #{tpu_custom_call.1} parent=1 // pred_region
      _
    $region25: #{tpu_custom_call.1} parent=1 // pred_fallthru
      _
    // Predicated region
    $region26: #{tpu_custom_call.1} parent=1 // pred_check
      _
    $region27: #{tpu_custom_call.1} parent=1 // pred_check_branch
      %52 = sbr.rel (0) target = $region29
    $region28: #{tpu_custom_call.1} parent=1 // pred_region
      %54 = vsyncadd [#allocation9], 0
      %s55 = sshll.u32 %s6, 4
      %s56 = int_to_ptr.hbm [resolvable:$true] %s55
      %s57 = sshll.u32 [#allocation10], 4
      %s58 = int_to_ptr.vmem [resolvable:$true] %s57
      %63 = dma.hbm_to_vmem [thread:$0]  %s56, 10240, %s58, [#allocation9], 640, 640, 40
    $region29: #{tpu_custom_call.1} parent=1 // pred_fallthru
      _
    // Predicated region
    $region30: #{tpu_custom_call.1} parent=1 // pred_check
      _
    $region31: #{tpu_custom_call.1} parent=1 // pred_check_branch
      %65 = sbr.rel (0) target = $region33
    $region32: #{tpu_custom_call.1} parent=1 // pred_region
      %67 = vsyncadd [#allocation12], 0
      %s68 = sshll.u32 %s7, 4
      %s69 = int_to_ptr.hbm [resolvable:$true] %s68
      %s70 = sshll.u32 [#allocation11], 4
      %s71 = int_to_ptr.vmem [resolvable:$true] %s70
      %76 = dma.hbm_to_vmem [thread:$0]  %s69, 2560, %s71, [#allocation12], 640, 640, 40
    $region33: #{tpu_custom_call.1} parent=1 // pred_fallthru
      _
    // Predicated region
    $region34: #{tpu_custom_call.1} parent=1 // pred_check
      _
    $region35: #{tpu_custom_call.1} parent=1 // pred_check_branch
      %78 = sbr.rel (0) target = $region37
    $region36: #{tpu_custom_call.1} parent=1 // pred_region
      %80 = dma.done [#allocation6], 640
    $region37: #{tpu_custom_call.1} parent=1 // pred_fallthru
      _
    // Predicated region
    $region38: #{tpu_custom_call.1} parent=1 // pred_check
      _
    $region39: #{tpu_custom_call.1} parent=1 // pred_check_branch
      %82 = sbr.rel (0) target = $region41
    $region40: #{tpu_custom_call.1} parent=1 // pred_region
      %84 = dma.done [#allocation9], 128
    $region41: #{tpu_custom_call.1} parent=1 // pred_fallthru
      _
    // Predicated region
    $region42: #{tpu_custom_call.1} parent=1 // pred_check
      _
    $region43: #{tpu_custom_call.1} parent=1 // pred_check_branch
      %86 = sbr.rel (0) target = $region45
    $region44: #{tpu_custom_call.1} parent=1 // pred_region
      %88 = dma.done [#allocation9], 10240
    $region45: #{tpu_custom_call.1} parent=1 // pred_fallthru
      _
    // Predicated region
    $region46: #{tpu_custom_call.1} parent=1 // pred_check
      _
    $region47: #{tpu_custom_call.1} parent=1 // pred_check_branch
      %90 = sbr.rel (0) target = $region49
    $region48: #{tpu_custom_call.1} parent=1 // pred_region
      %92 = dma.done [#allocation12], 2560
    $region49: #{tpu_custom_call.1} parent=1 // pred_fallthru
      _
    %p93 = scmp.eq.s32.totalorder 0, 0
    // Predicated region
    $region50: #{tpu_custom_call.1} parent=1 // pred_check
      %p94 = pneg %p93
    $region51: #{tpu_custom_call.1} parent=1 // pred_check_branch
      %96 = sbr.rel (%p94) target = $region53
    $region52: #{tpu_custom_call.1} parent=1 // pred_region
      %v97 = vld [vmem:[%s3] sm:$0xff]
      %98 = vst [vmem:[#allocation2] sm:$0xff] %v97
      %v99 = vld [vmem:[#allocation8] sm:$0xff]
      %100 = vst [vmem:[#allocation3] sm:$0xff] %v99
      %v101 = vld [vmem:[%s5] sm:$0xff]
      %vm102 = vcmask 7168
      %103 = vst.msk [vmem:[#allocation4] sm:$0xff] %vm102, %v101
    $region53: #{tpu_custom_call.1} parent=1 // pred_fallthru
      _
    %v104 = vld [vmem:[#allocation10] sm:$0xff]
    %v105 = vld [vmem:[#allocation10 + $0x8] sm:$0xff]
    %v106 = vld [vmem:[#allocation10 + $0x10] sm:$0xff]
    %v107 = vld [vmem:[#allocation10 + $0x18] sm:$0xff]
    %v108 = vld [vmem:[#allocation10 + $0x20] sm:$0xff]
    %v109 = vld [vmem:[#allocation10 + $0x28] sm:$0xff]
    %v110 = vld [vmem:[#allocation10 + $0x30] sm:$0xff]
    %v111 = vld [vmem:[#allocation10 + $0x38] sm:$0xff]
    %v112 = vld [vmem:[#allocation10 + $0x40] sm:$0xff]
    %v113 = vld [vmem:[#allocation10 + $0x48] sm:$0xff]
    %v114 = vld [vmem:[#allocation10 + $0x50] sm:$0xff]
    %v115 = vld [vmem:[#allocation10 + $0x58] sm:$0xff]
    %v116 = vld [vmem:[#allocation10 + $0x60] sm:$0xff]
    %v117 = vld [vmem:[#allocation10 + $0x68] sm:$0xff]
    %v118 = vld [vmem:[#allocation10 + $0x70] sm:$0xff]
    %v119 = vld [vmem:[#allocation10 + $0x78] sm:$0xff]
    %v120 = vld [vmem:[#allocation10 + $0x80] sm:$0xff]
    %v121 = vld [vmem:[#allocation10 + $0x88] sm:$0xff]
    %v122 = vld [vmem:[#allocation10 + $0x90] sm:$0xff]
    %v123 = vld [vmem:[#allocation10 + $0x98] sm:$0xff]
    %v124 = vld [vmem:[#allocation10 + $0xa0] sm:$0xff]
    %v125 = vld [vmem:[#allocation10 + $0xa8] sm:$0xff]
    %v126 = vld [vmem:[#allocation10 + $0xb0] sm:$0xff]
    %v127 = vld [vmem:[#allocation10 + $0xb8] sm:$0xff]
    %v128 = vld [vmem:[#allocation10 + $0xc0] sm:$0xff]
    %v129 = vld [vmem:[#allocation10 + $0xc8] sm:$0xff]
    %v130 = vld [vmem:[#allocation10 + $0xd0] sm:$0xff]
    %v131 = vld [vmem:[#allocation10 + $0xd8] sm:$0xff]
    %v132 = vld [vmem:[#allocation10 + $0xe0] sm:$0xff]
    %v133 = vld [vmem:[#allocation10 + $0xe8] sm:$0xff]
    %v134 = vld [vmem:[#allocation10 + $0xf0] sm:$0xff]
    %v135 = vld [vmem:[#allocation10 + $0xf8] sm:$0xff]
    %v136 = vld [vmem:[#allocation10 + $0x100] sm:$0xff]
    %v137 = vld [vmem:[#allocation10 + $0x108] sm:$0xff]
    %v138 = vld [vmem:[#allocation10 + $0x110] sm:$0xff]
    %v139 = vld [vmem:[#allocation10 + $0x118] sm:$0xff]
    %v140 = vld [vmem:[#allocation10 + $0x120] sm:$0xff]
    %v141 = vld [vmem:[#allocation10 + $0x128] sm:$0xff]
    %v142 = vld [vmem:[#allocation10 + $0x130] sm:$0xff]
    %v143 = vld [vmem:[#allocation10 + $0x138] sm:$0xff]
    %v144 = vld [vmem:[#allocation10 + $0x140] sm:$0xff]
    %v145 = vld [vmem:[#allocation10 + $0x148] sm:$0xff]
    %v146 = vld [vmem:[#allocation10 + $0x150] sm:$0xff]
    %v147 = vld [vmem:[#allocation10 + $0x158] sm:$0xff]
    %v148 = vld [vmem:[#allocation10 + $0x160] sm:$0xff]
    %v149 = vld [vmem:[#allocation10 + $0x168] sm:$0xff]
    %v150 = vld [vmem:[#allocation10 + $0x170] sm:$0xff]
    %v151 = vld [vmem:[#allocation10 + $0x178] sm:$0xff]
    %v152 = vld [vmem:[#allocation10 + $0x180] sm:$0xff]
    %v153 = vld [vmem:[#allocation10 + $0x188] sm:$0xff]
    %v154 = vld [vmem:[#allocation10 + $0x190] sm:$0xff]
    %v155 = vld [vmem:[#allocation10 + $0x198] sm:$0xff]
    %v156 = vld [vmem:[#allocation10 + $0x1a0] sm:$0xff]
    %v157 = vld [vmem:[#allocation10 + $0x1a8] sm:$0xff]
    %v158 = vld [vmem:[#allocation10 + $0x1b0] sm:$0xff]
    %v159 = vld [vmem:[#allocation10 + $0x1b8] sm:$0xff]
    %v160 = vld [vmem:[#allocation10 + $0x1c0] sm:$0xff]
    %v161 = vld [vmem:[#allocation10 + $0x1c8] sm:$0xff]
    %v162 = vld [vmem:[#allocation10 + $0x1d0] sm:$0xff]
    %v163 = vld [vmem:[#allocation10 + $0x1d8] sm:$0xff]
    %v164 = vld [vmem:[#allocation10 + $0x1e0] sm:$0xff]
    %v165 = vld [vmem:[#allocation10 + $0x1e8] sm:$0xff]
    %v166 = vld [vmem:[#allocation10 + $0x1f0] sm:$0xff]
    %v167 = vld [vmem:[#allocation10 + $0x1f8] sm:$0xff]
    %v168 = vld [vmem:[#allocation10 + $0x200] sm:$0xff]
    %v169 = vld [vmem:[#allocation10 + $0x208] sm:$0xff]
    %v170 = vld [vmem:[#allocation10 + $0x210] sm:$0xff]
    %v171 = vld [vmem:[#allocation10 + $0x218] sm:$0xff]
    %v172 = vld [vmem:[#allocation10 + $0x220] sm:$0xff]
    %v173 = vld [vmem:[#allocation10 + $0x228] sm:$0xff]
    %v174 = vld [vmem:[#allocation10 + $0x230] sm:$0xff]
    %v175 = vld [vmem:[#allocation10 + $0x238] sm:$0xff]
    %v176 = vld [vmem:[#allocation10 + $0x240] sm:$0xff]
    %v177 = vld [vmem:[#allocation10 + $0x248] sm:$0xff]
    %v178 = vld [vmem:[#allocation10 + $0x250] sm:$0xff]
    %v179 = vld [vmem:[#allocation10 + $0x258] sm:$0xff]
    %v180 = vld [vmem:[#allocation10 + $0x260] sm:$0xff]
    %v181 = vld [vmem:[#allocation10 + $0x268] sm:$0xff]
    %v182 = vld [vmem:[#allocation10 + $0x270] sm:$0xff]
    %v183 = vld [vmem:[#allocation10 + $0x278] sm:$0xff]
    %v184 = vld [vmem:[#allocation11] sm:$0xff]
    %v185 = vld [vmem:[#allocation11 + $0x8] sm:$0xff]
    %v186 = vld [vmem:[#allocation11 + $0x10] sm:$0xff]
    %v187 = vld [vmem:[#allocation11 + $0x18] sm:$0xff]
    %v188 = vld [vmem:[#allocation11 + $0x20] sm:$0xff]
    %v189 = vld [vmem:[#allocation11 + $0x28] sm:$0xff]
    %v190 = vld [vmem:[#allocation11 + $0x30] sm:$0xff]
    %v191 = vld [vmem:[#allocation11 + $0x38] sm:$0xff]
    %v192 = vld [vmem:[#allocation11 + $0x40] sm:$0xff]
    %v193 = vld [vmem:[#allocation11 + $0x48] sm:$0xff]
    %v194 = vld [vmem:[#allocation11 + $0x50] sm:$0xff]
    %v195 = vld [vmem:[#allocation11 + $0x58] sm:$0xff]
    %v196 = vld [vmem:[#allocation11 + $0x60] sm:$0xff]
    %v197 = vld [vmem:[#allocation11 + $0x68] sm:$0xff]
    %v198 = vld [vmem:[#allocation11 + $0x70] sm:$0xff]
    %v199 = vld [vmem:[#allocation11 + $0x78] sm:$0xff]
    %v200 = vld [vmem:[#allocation11 + $0x80] sm:$0xff]
    %v201 = vld [vmem:[#allocation11 + $0x88] sm:$0xff]
    %v202 = vld [vmem:[#allocation11 + $0x90] sm:$0xff]
    %v203 = vld [vmem:[#allocation11 + $0x98] sm:$0xff]
    %v204 = vld [vmem:[#allocation2] sm:$0xff]
    %v205 = vld [vmem:[#allocation3] sm:$0xff]
    %v206 = vld [vmem:[#allocation4] sm:$0xff]
    %v207 = vld [vmem:[#allocation5] sm:$0xff]
    %v208 = vld [vmem:[#allocation5 + $0x8] sm:$0xff]
    %v209 = vld [vmem:[#allocation5 + $0x10] sm:$0xff]
    %v210 = vld [vmem:[#allocation5 + $0x18] sm:$0xff]
    %v211 = vld [vmem:[#allocation5 + $0x20] sm:$0xff]
    %v212 = vld [vmem:[%s1] sm:$0xff]
    %v213 = vld [vmem:[%s2] sm:$0xff]
    %214 = vmatpush.msra.mxu0 %v179
    %215 = vmatpush.msra.mxu0 %v174
    %216 = vmatpush.msra.mxu0 %v169
    %217 = vmatpush.msra.mxu0 %v164
    %218 = vmatpush.msra.mxu0 %v159
    %219 = vmatpush.msra.mxu0 %v154
    %220 = vmatpush.msra.mxu0 %v149
    %221 = vmatpush.msra.mxu0 %v144
    %222 = vmatpush.msra.mxu0 %v139
    %223 = vmatpush.msra.mxu0 %v134
    %224 = vmatpush.msra.mxu0 %v129
    %225 = vmatpush.msra.mxu0 %v124
    %226 = vmatpush.msra.mxu0 %v119
    %227 = vmatpush.msra.mxu0 %v114
    %228 = vmatpush.msra.mxu0 %v109
    %229 = vmatpush.msra.mxu0 %v104
    %230 = vmatmul.f32.gmra.mxu0 %v204
    %v231 = vpop.f32.mrf.mxu0
    %v232 = vadd.f32 0.0, %v231
    %233 = vdwg.mxu0
    %234 = vmatpush.msra.mxu0 %v180
    %235 = vmatpush.msra.mxu0 %v175
    %236 = vmatpush.msra.mxu0 %v170
    %237 = vmatpush.msra.mxu0 %v165
    %238 = vmatpush.msra.mxu0 %v160
    %239 = vmatpush.msra.mxu0 %v155
    %240 = vmatpush.msra.mxu0 %v150
    %241 = vmatpush.msra.mxu0 %v145
    %242 = vmatpush.msra.mxu0 %v140
    %243 = vmatpush.msra.mxu0 %v135
    %244 = vmatpush.msra.mxu0 %v130
    %245 = vmatpush.msra.mxu0 %v125
    %246 = vmatpush.msra.mxu0 %v120
    %247 = vmatpush.msra.mxu0 %v115
    %248 = vmatpush.msra.mxu0 %v110
    %249 = vmatpush.msra.mxu0 %v105
    %250 = vmatmul.f32.gmra.mxu0 %v204
    %v251 = vpop.f32.mrf.mxu0
    %v252 = vadd.f32 0.0, %v251
    %253 = vdwg.mxu0
    %254 = vmatpush.msra.mxu0 %v181
    %255 = vmatpush.msra.mxu0 %v176
    %256 = vmatpush.msra.mxu0 %v171
    %257 = vmatpush.msra.mxu0 %v166
    %258 = vmatpush.msra.mxu0 %v161
    %259 = vmatpush.msra.mxu0 %v156
    %260 = vmatpush.msra.mxu0 %v151
    %261 = vmatpush.msra.mxu0 %v146
    %262 = vmatpush.msra.mxu0 %v141
    %263 = vmatpush.msra.mxu0 %v136
    %264 = vmatpush.msra.mxu0 %v131
    %265 = vmatpush.msra.mxu0 %v126
    %266 = vmatpush.msra.mxu0 %v121
    %267 = vmatpush.msra.mxu0 %v116
    %268 = vmatpush.msra.mxu0 %v111
    %269 = vmatpush.msra.mxu0 %v106
    %270 = vmatmul.f32.gmra.mxu0 %v204
    %v271 = vpop.f32.mrf.mxu0
    %v272 = vadd.f32 0.0, %v271
    %273 = vdwg.mxu0
    %274 = vmatpush.msra.mxu0 %v182
    %275 = vmatpush.msra.mxu0 %v177
    %276 = vmatpush.msra.mxu0 %v172
    %277 = vmatpush.msra.mxu0 %v167
    %278 = vmatpush.msra.mxu0 %v162
    %279 = vmatpush.msra.mxu0 %v157
    %280 = vmatpush.msra.mxu0 %v152
    %281 = vmatpush.msra.mxu0 %v147
    %282 = vmatpush.msra.mxu0 %v142
    %283 = vmatpush.msra.mxu0 %v137
    %284 = vmatpush.msra.mxu0 %v132
    %285 = vmatpush.msra.mxu0 %v127
    %286 = vmatpush.msra.mxu0 %v122
    %287 = vmatpush.msra.mxu0 %v117
    %288 = vmatpush.msra.mxu0 %v112
    %289 = vmatpush.msra.mxu0 %v107
    %290 = vmatmul.f32.gmra.mxu0 %v204
    %v291 = vpop.f32.mrf.mxu0
    %v292 = vadd.f32 0.0, %v291
    %293 = vdwg.mxu0
    %294 = vmatpush.msra.mxu0 %v183
    %295 = vmatpush.msra.mxu0 %v178
    %296 = vmatpush.msra.mxu0 %v173
    %297 = vmatpush.msra.mxu0 %v168
    %298 = vmatpush.msra.mxu0 %v163
    %299 = vmatpush.msra.mxu0 %v158
    %300 = vmatpush.msra.mxu0 %v153
    %301 = vmatpush.msra.mxu0 %v148
    %302 = vmatpush.msra.mxu0 %v143
    %303 = vmatpush.msra.mxu0 %v138
    %304 = vmatpush.msra.mxu0 %v133
    %305 = vmatpush.msra.mxu0 %v128
    %306 = vmatpush.msra.mxu0 %v123
    %307 = vmatpush.msra.mxu0 %v118
    %308 = vmatpush.msra.mxu0 %v113
    %309 = vmatpush.msra.mxu0 %v108
    %310 = vmatmul.f32.gmra.mxu0 %v204
    %v311 = vpop.f32.mrf.mxu0
    %v312 = vadd.f32 0.0, %v311
    %313 = vdwg.mxu0
    %v314 = vadd.f32 %v207, %v232
    %v315 = vadd.f32 %v208, %v252
    %v316 = vadd.f32 %v209, %v272
    %v317 = vadd.f32 %v210, %v292
    %v318 = vadd.f32 %v211, %v312
    %320 = vset.pattern.permute.xlu0 0
    %321 = vperm.xlu0 %320, %v206
    %v322 = vpop.permute.xlu0 %321
    %v324 = vmul.f32 %v213, %v322
    %vm325 = vcmask 261120
    %v327 = vsel %vm325, %v324, 0
    %329 = vmatpush.msra.mxu0 0.0
    %330 = vmatpush.msra.mxu0 0.0
    %331 = vmatpush.msra.mxu0 0.0
    %332 = vmatpush.msra.mxu0 0.0
    %333 = vmatpush.msra.mxu0 0.0
    %334 = vmatpush.msra.mxu0 0.0
    %335 = vmatpush.msra.mxu0 0.0
    %336 = vmatpush.msra.mxu0 0.0
    %337 = vmatpush.msra.mxu0 0.0
    %338 = vmatpush.msra.mxu0 0.0
    %339 = vmatpush.msra.mxu0 0.0
    %340 = vmatpush.msra.mxu0 0.0
    %341 = vmatpush.msra.mxu0 %v199
    %342 = vmatpush.msra.mxu0 %v194
    %343 = vmatpush.msra.mxu0 %v189
    %344 = vmatpush.msra.mxu0 %v184
    %345 = vmatmul.f32.gmra.mxu0 %v327
    %v346 = vpop.f32.mrf.mxu0
    %v347 = vadd.f32 0.0, %v346
    %348 = vdwg.mxu0
    %349 = vmatpush.msra.mxu0 0.0
    %350 = vmatpush.msra.mxu0 0.0
    %351 = vmatpush.msra.mxu0 0.0
    %352 = vmatpush.msra.mxu0 0.0
    %353 = vmatpush.msra.mxu0 0.0
    %354 = vmatpush.msra.mxu0 0.0
    %355 = vmatpush.msra.mxu0 0.0
    %356 = vmatpush.msra.mxu0 0.0
    %357 = vmatpush.msra.mxu0 0.0
    %358 = vmatpush.msra.mxu0 0.0
    %359 = vmatpush.msra.mxu0 0.0
    %360 = vmatpush.msra.mxu0 0.0
    %361 = vmatpush.msra.mxu0 %v200
    %362 = vmatpush.msra.mxu0 %v195
    %363 = vmatpush.msra.mxu0 %v190
    %364 = vmatpush.msra.mxu0 %v185
    %365 = vmatmul.f32.gmra.mxu0 %v327
    %v366 = vpop.f32.mrf.mxu0
    %v367 = vadd.f32 0.0, %v366
    %368 = vdwg.mxu0
    %369 = vmatpush.msra.mxu0 0.0
    %370 = vmatpush.msra.mxu0 0.0
    %371 = vmatpush.msra.mxu0 0.0
    %372 = vmatpush.msra.mxu0 0.0
    %373 = vmatpush.msra.mxu0 0.0
    %374 = vmatpush.msra.mxu0 0.0
    %375 = vmatpush.msra.mxu0 0.0
    %376 = vmatpush.msra.mxu0 0.0
    %377 = vmatpush.msra.mxu0 0.0
    %378 = vmatpush.msra.mxu0 0.0
    %379 = vmatpush.msra.mxu0 0.0
    %380 = vmatpush.msra.mxu0 0.0
    %381 = vmatpush.msra.mxu0 %v201
    %382 = vmatpush.msra.mxu0 %v196
    %383 = vmatpush.msra.mxu0 %v191
    %384 = vmatpush.msra.mxu0 %v186
    %385 = vmatmul.f32.gmra.mxu0 %v327
    %v386 = vpop.f32.mrf.mxu0
    %v387 = vadd.f32 0.0, %v386
    %388 = vdwg.mxu0
    %389 = vmatpush.msra.mxu0 0.0
    %390 = vmatpush.msra.mxu0 0.0
    %391 = vmatpush.msra.mxu0 0.0
    %392 = vmatpush.msra.mxu0 0.0
    %393 = vmatpush.msra.mxu0 0.0
    %394 = vmatpush.msra.mxu0 0.0
    %395 = vmatpush.msra.mxu0 0.0
    %396 = vmatpush.msra.mxu0 0.0
    %397 = vmatpush.msra.mxu0 0.0
    %398 = vmatpush.msra.mxu0 0.0
    %399 = vmatpush.msra.mxu0 0.0
    %400 = vmatpush.msra.mxu0 0.0
    %401 = vmatpush.msra.mxu0 %v202
    %402 = vmatpush.msra.mxu0 %v197
    %403 = vmatpush.msra.mxu0 %v192
    %404 = vmatpush.msra.mxu0 %v187
    %405 = vmatmul.f32.gmra.mxu0 %v327
    %v406 = vpop.f32.mrf.mxu0
    %v407 = vadd.f32 0.0, %v406
    %408 = vdwg.mxu0
    %409 = vmatpush.msra.mxu0 0.0
    %410 = vmatpush.msra.mxu0 0.0
    %411 = vmatpush.msra.mxu0 0.0
    %412 = vmatpush.msra.mxu0 0.0
    %413 = vmatpush.msra.mxu0 0.0
    %414 = vmatpush.msra.mxu0 0.0
    %415 = vmatpush.msra.mxu0 0.0
    %416 = vmatpush.msra.mxu0 0.0
    %417 = vmatpush.msra.mxu0 0.0
    %418 = vmatpush.msra.mxu0 0.0
    %419 = vmatpush.msra.mxu0 0.0
    %420 = vmatpush.msra.mxu0 0.0
    %421 = vmatpush.msra.mxu0 %v203
    %422 = vmatpush.msra.mxu0 %v198
    %423 = vmatpush.msra.mxu0 %v193
    %424 = vmatpush.msra.mxu0 %v188
    %425 = vmatmul.f32.gmra.mxu0 %v327
    %v426 = vpop.f32.mrf.mxu0
    %v427 = vadd.f32 0.0, %v426
    %428 = vdwg.mxu0
    %v429 = vadd.f32 %v314, %v347
    %v430 = vadd.f32 %v315, %v367
    %v431 = vadd.f32 %v316, %v387
    %v432 = vadd.f32 %v317, %v407
    %v433 = vadd.f32 %v318, %v427
    %v434 = vxor.u32 %v429, 2147483648
    %v435 = vmul.f32 %v434, 1.442695
    %v436 = vpow.pop %v435
    %v437 = vadd.f32 %v436, 1.0
    %v438 = vrcp.pop %v437
    %v439 = vmul.f32 %v437, %v438
    %v440 = vsub.f32 1.0, %v439
    %v441 = vmul.f32 %v438, %v440
    %v442 = vadd.f32 %v438, %v441
    %vm443 = vweird.f32 %v437
    %vm444 = vweird.f32 %v438
    %vm445 = vmor %vm443, %vm444
    %v446 = vsel %vm445, %v438, %v442
    %v447 = vand.u32 2147483647, %v437
    %vm448 = vcmp.eq.f32.partialorder %v447, 8.507059e+37
    %v449 = vand.u32 %v437, 2147483648
    %v450 = vor.u32 1.1754944e-38, %v449
    %v451 = vsel %vm448, %v450, %v446
    %v452 = vmul.f32 1.0, %v451
    %v453 = vtanh.pop %v430
    %v454 = vmul.f32 %v452, %v453
    %v455 = vxor.u32 %v431, 2147483648
    %v456 = vmul.f32 %v455, 1.442695
    %v457 = vpow.pop %v456
    %v458 = vadd.f32 %v457, 1.0
    %v459 = vrcp.pop %v458
    %v460 = vmul.f32 %v458, %v459
    %v461 = vsub.f32 1.0, %v460
    %v462 = vmul.f32 %v459, %v461
    %v463 = vadd.f32 %v459, %v462
    %vm464 = vweird.f32 %v458
    %vm465 = vweird.f32 %v459
    %vm466 = vmor %vm464, %vm465
    %v467 = vsel %vm466, %v459, %v463
    %v468 = vand.u32 2147483647, %v458
    %vm469 = vcmp.eq.f32.partialorder %v468, 8.507059e+37
    %v470 = vand.u32 %v458, 2147483648
    %v471 = vor.u32 1.1754944e-38, %v470
    %v472 = vsel %vm469, %v471, %v467
    %v473 = vmul.f32 1.0, %v472
    %v474 = vxor.u32 %v432, 2147483648
    %v475 = vmul.f32 %v474, 1.442695
    %v476 = vpow.pop %v475
    %v477 = vadd.f32 %v476, 1.0
    %v478 = vrcp.pop %v477
    %v479 = vmul.f32 %v477, %v478
    %v480 = vsub.f32 1.0, %v479
    %v481 = vmul.f32 %v478, %v480
    %v482 = vadd.f32 %v478, %v481
    %vm483 = vweird.f32 %v477
    %vm484 = vweird.f32 %v478
    %vm485 = vmor %vm483, %vm484
    %v486 = vsel %vm485, %v478, %v482
    %v487 = vand.u32 2147483647, %v477
    %vm488 = vcmp.eq.f32.partialorder %v487, 8.507059e+37
    %v489 = vand.u32 %v477, 2147483648
    %v490 = vor.u32 1.1754944e-38, %v489
    %v491 = vsel %vm488, %v490, %v486
    %v492 = vmul.f32 1.0, %v491
    %v493 = vsub.f32 1.0, %v206
    %v494 = vsub.f32 1.0, %v212
    %v495 = vmul.f32 %v493, %v494
    %v496 = vmul.f32 %v493, %v212
    %v497 = vmul.f32 %v322, %v454
    %499 = vset.pattern.permute.xlu0 0
    %500 = vperm.xlu0 %499, %v495
    %v501 = vpop.permute.xlu0 %500
    %v503 = vmul.f32 %v501, %v205
    %v504 = vadd.f32 %v497, %v503
    %v505 = vmul.f32 %v492, %v205
    %v506 = vadd.f32 %v505, %v454
    %508 = vset.pattern.permute.xlu0 0
    %509 = vperm.xlu0 %508, %v496
    %v510 = vpop.permute.xlu0 %509
    %v512 = vmul.f32 %v510, %v506
    %v513 = vadd.f32 %v504, %v512
    %v514 = vtanh.pop %v513
    %v515 = vmul.f32 %v473, %v514
    %v516 = vmul.f32 %v322, %v515
    %v517 = vmul.f32 %v501, %v204
    %v518 = vadd.f32 %v516, %v517
    %v519 = vmul.f32 %v510, %v515
    %v520 = vadd.f32 %v518, %v519
    %v521 = vadd.f32 %v433, 1.0
    %v522 = vmul.f32 %v521, 0.5
    %v523 = vmax.f32 %v522, 0.0
    %v524 = vmin.f32 %v523, 1.0
    %vm525 = vcmp.gt.f32.partialorder %v524, 0.5
    %v526 = vsel %vm525, 1.0, 0.0
    %527 = vst [vmem:[#allocation13] sm:$0xff] %v520
    %528 = vst [vmem:[#allocation14] sm:$0xff] %v513
    %529 = vst [vmem:[#allocation16] sm:$0xff] %v526
    %530 = vst [vmem:[#allocation2] sm:$0xff] %v520
    %531 = vst [vmem:[#allocation3] sm:$0xff] %v513
    %vm532 = vcmask 7168
    %533 = vst.msk [vmem:[#allocation4] sm:$0xff] %vm532, %v526
    // Predicated region
    $region54: #{tpu_custom_call.1} parent=1 // pred_check
      _
    $region55: #{tpu_custom_call.1} parent=1 // pred_check_branch
      %535 = sbr.rel (0) target = $region57
    $region56: #{tpu_custom_call.1} parent=1 // pred_region
      %537 = vsyncadd [#allocation7], 0
      %s539 = sshll.u32 [#allocation13], 4
      %s540 = int_to_ptr.vmem [resolvable:$true] %s539
      %s541 = sshll.u32 %s8, 4
      %s542 = int_to_ptr.hbm [resolvable:$true] %s541
      %544 = dma.vmem_to_hbm [thread:$0]  %s540, 128, %s542, [#allocation7]
    $region57: #{tpu_custom_call.1} parent=1 // pred_fallthru
      _
    // Predicated region
    $region58: #{tpu_custom_call.1} parent=1 // pred_check
      _
    $region59: #{tpu_custom_call.1} parent=1 // pred_check_branch
      %546 = sbr.rel (0) target = $region61
    $region60: #{tpu_custom_call.1} parent=1 // pred_region
      %548 = vsyncadd [#allocation15], 0
      %s550 = sshll.u32 [#allocation14], 4
      %s551 = int_to_ptr.vmem [resolvable:$true] %s550
      %s552 = sshll.u32 %s9, 4
      %s553 = int_to_ptr.hbm [resolvable:$true] %s552
      %555 = dma.vmem_to_hbm [thread:$0]  %s551, 128, %s553, [#allocation15]
    $region61: #{tpu_custom_call.1} parent=1 // pred_fallthru
      _
    // Predicated region
    $region62: #{tpu_custom_call.1} parent=1 // pred_check
      _
    $region63: #{tpu_custom_call.1} parent=1 // pred_check_branch
      %557 = sbr.rel (0) target = $region65
    $region64: #{tpu_custom_call.1} parent=1 // pred_region
      %559 = vsyncadd [#allocation15], 0
      %s561 = sshll.u32 [#allocation16], 4
      %s562 = int_to_ptr.vmem [resolvable:$true] %s561
      %s563 = sshll.u32 %s10, 4
      %s564 = int_to_ptr.hbm [resolvable:$true] %s563
      %566 = dma.vmem_to_hbm [thread:$0]  %s562, 128, %s564, [#allocation15]
    $region65: #{tpu_custom_call.1} parent=1 // pred_fallthru
      _
    // Predicated region
    $region66: #{tpu_custom_call.1} parent=1 // pred_check
      _
    $region67: #{tpu_custom_call.1} parent=1 // pred_check_branch
      %568 = sbr.rel (0) target = $region69
    $region68: #{tpu_custom_call.1} parent=1 // pred_region
      %570 = dma.done [#allocation7], 128
    $region69: #{tpu_custom_call.1} parent=1 // pred_fallthru
      _
    // Predicated region
    $region70: #{tpu_custom_call.1} parent=1 // pred_check
      _
    $region71: #{tpu_custom_call.1} parent=1 // pred_check_branch
      %572 = sbr.rel (0) target = $region73
    $region72: #{tpu_custom_call.1} parent=1 // pred_region
      %574 = dma.done [#allocation15], 128
    $region73: #{tpu_custom_call.1} parent=1 // pred_fallthru
      _
    // Predicated region
    $region74: #{tpu_custom_call.1} parent=1 // pred_check
      _
    $region75: #{tpu_custom_call.1} parent=1 // pred_check_branch
      %576 = sbr.rel (0) target = $region77
    $region76: #{tpu_custom_call.1} parent=1 // pred_region
      %578 = dma.done [#allocation15], 128
    $region77: #{tpu_custom_call.1} parent=1 // pred_fallthru
      _
    %579 = vsyncpa [#allocation6], 1
    %580 = vsyncpa [#allocation9], 1
    %581 = vsyncpa [#allocation12], 1
    %582 = vsyncpa [#allocation7], 1
    %583 = vsyncpa [#allocation15], 1

</llo_original>
